<compile_context>
chip_gen: v6e
topology: v6e:2x2x1
jax: 0.10.0
libtpu: 0.0.40
codegen_flags: <defaults>
</compile_context>

<pallas_src>
import jax
import jax.numpy as jnp
from jax.experimental import pallas as pl
from jax.experimental.pallas import tpu as pltpu

LANE = 128
SUBLANE = 8


def _round_up(x, m):
    return ((x + m - 1) // m) * m


def _effective_1x1_conv_kernel(w_ref, b_ref, x_ref, o_ref):
    """o[co] = sum_ci w[co, ci] * x[ci] + b[co]   (pure VPU, dense planes).

    w_ref: SMEM (C_out * C_in,) f32   effective weights, row-major [co, ci]
    b_ref: SMEM (C_out,)        f32   effective bias
    x_ref: VMEM (C_in, S_tile, 128)   input tile  (pixels sublane x lane dense)
    o_ref: VMEM (C_out, S_tile, 128)  output tile
    """
    c_in = x_ref.shape[0]
    c_out = o_ref.shape[0]
    for co in range(c_out):
        # Whole-channel planes (S_tile, 128): no sublane-offset slices, no
        # concatenate along sublanes -> no XLU relayouts, direct row stores.
        acc = x_ref[0].astype(jnp.float32) * w_ref[co * c_in] + b_ref[co]
        for ci in range(1, c_in):
            acc = acc + x_ref[ci].astype(jnp.float32) * w_ref[co * c_in + ci]
        o_ref[co] = acc.astype(o_ref.dtype)


def model_forward(x_nchw, w1, b1, w2, b2, *,
                  max_tile_pixels=256 * 1024,   # ~8 MiB VMEM double-buffered
                  force_pallas=False):
    """x_nchw: (N, C_in, H, W) f32
       w1: (C_mid, C_in[,1,1]), b1: (C_mid,)   -- Conv2d(3, 64, 1)
       w2: (C_out, C_mid[,1,1]), b2: (C_out,)  -- Conv2d(64, 1, 1)
       returns (N, C_out, H, W)
    """
    N, C_in, H, W = x_nchw.shape
    C_mid = w1.shape[0]
    C_out = w2.shape[0]
    HW = H * W
    f32 = jnp.float32

    # Collapse the two 1x1 convs (no nonlinearity between them) into one
    # effective affine map. This tiny matmul is done once in XLA.
    w1m = w1.reshape(C_mid, C_in).astype(f32)
    w2m = w2.reshape(C_out, C_mid).astype(f32)
    w_eff = jnp.dot(w2m, w1m)                                        # (C_out, C_in)
    b_eff = jnp.dot(w2m, b1.reshape(C_mid).astype(f32)) + b2.reshape(C_out).astype(f32)

    # Tiny-input fast path: below ~16K pixels the pallas_call launch dominates;
    # plain XLA fuses the 6-flop/pixel affine into one pass.
    if not force_pallas and N * HW < 16 * 1024:
        y = jnp.einsum("ncp,oc->nop", x_nchw.reshape(N, C_in, HW).astype(f32), w_eff)
        y = y + b_eff[None, :, None]
        return y.astype(x_nchw.dtype).reshape(N, C_out, H, W)

    # Pixels become dense (S, 128) planes: 128-lane axis + S sublane rows.
    hw_pad = _round_up(HW, LANE)
    x_flat = x_nchw.reshape(N, C_in, HW)
    if hw_pad != HW:
        # Pad only to the next lane multiple (never to tile * num_tiles).
        x_flat = jnp.pad(x_flat, ((0, 0), (0, 0), (0, hw_pad - HW)))
    S = hw_pad // LANE
    x_planes = x_flat.reshape(N, C_in, S, LANE)

    # Tile the sublane (S) axis. Double-buffered VMEM footprint:
    #   (C_in + C_out) * s_tile * 128 * 4 B * 2  ->  8 MiB at s_tile = 2048.
    max_s_tile = max(SUBLANE, max_tile_pixels // LANE)
    if S <= max_s_tile:
        s_tile = S
        # v7x has 2 TensorCores: force >= 2 grid steps when N == 1.
        if N == 1 and S >= 2 * SUBLANE:
            s_tile = _round_up(pl.cdiv(S, 2), SUBLANE)
    else:
        s_tile = max_s_tile
    num_s_tiles = pl.cdiv(S, s_tile)   # last block may be ragged: per-pixel op,
                                       # OOB reads unused garbage, OOB writes dropped.
    grid = (N, num_s_tiles)

    cost = pl.CostEstimate(
        flops=2 * N * HW * C_in * C_out,          # fused op, not original 2-conv cost
        transcendentals=0,
        bytes_accessed=4 * N * hw_pad * (C_in + C_out),
    )

    out_planes = pl.pallas_call(
        _effective_1x1_conv_kernel,
        out_shape=jax.ShapeDtypeStruct((N, C_out, S, LANE), x_nchw.dtype),
        grid_spec=pltpu.PrefetchScalarGridSpec(
            num_scalar_prefetch=0,
            grid=grid,
            in_specs=[
                pl.BlockSpec(memory_space=pltpu.MemorySpace.SMEM),     # w_eff (flat)
                pl.BlockSpec(memory_space=pltpu.MemorySpace.SMEM),     # b_eff
                pl.BlockSpec((None, C_in, s_tile, LANE), lambda n, t: (n, 0, t, 0)),
            ],
            out_specs=pl.BlockSpec((None, C_out, s_tile, LANE),
                                   lambda n, t: (n, 0, t, 0)),
        ),
        compiler_params=pltpu.CompilerParams(
            dimension_semantics=("parallel", "parallel")),
        cost_estimate=cost,
    )(w_eff.reshape(-1), b_eff, x_planes)

    out_flat = out_planes.reshape(N, C_out, hw_pad)
    if hw_pad != HW:
        out_flat = out_flat[:, :, :HW]
    return out_flat.reshape(N, C_out, H, W)


if __name__ == "__main__":
    key = jax.random.PRNGKey(0)
    k_x, k_w1, k_b1, k_w2, k_b2 = jax.random.split(key, 5)

    # Small shapes consistent with the module (channel dims fixed by __init__).
    N, C_in, H, W = 2, 3, 16, 16
    C_mid, C_out = 64, 1

    x = jax.random.normal(k_x, (N, C_in, H, W), dtype=jnp.float32)

    # nn.Conv2d-shaped 1x1 weights (out, in, 1, 1) and biases.
    w1 = jax.random.normal(k_w1, (C_mid, C_in, 1, 1), dtype=jnp.float32) * 0.1
    b1 = jax.random.normal(k_b1, (C_mid,), dtype=jnp.float32) * 0.1
    w2 = jax.random.normal(k_w2, (C_out, C_mid, 1, 1), dtype=jnp.float32) * 0.1
    b2 = jax.random.normal(k_b2, (C_out,), dtype=jnp.float32) * 0.1

    # Force the Pallas path even at this demo size so the kernel is exercised.
    fwd = jax.jit(lambda a, b, c, d, e: model_forward(a, b, c, d, e, force_pallas=True))
    out = jax.block_until_ready(fwd(x, w1, b1, w2, b2))

    # Plain-JAX reference of the ORIGINAL (uncollapsed) two-conv forward.
    x_nhwc = jnp.transpose(x, (0, 2, 3, 1))
    w1m = w1.reshape(C_mid, C_in)
    w2m = w2.reshape(C_out, C_mid)
    h_ref = jnp.einsum("nhwc,oc->nhwo", x_nhwc, w1m) + b1
    y_ref = jnp.einsum("nhwc,oc->nhwo", h_ref, w2m) + b2
    y_ref = jnp.transpose(y_ref, (0, 3, 1, 2))

    assert out.shape == (N, C_out, H, W)
    assert jnp.allclose(out, y_ref, atol=1e-4, rtol=1e-4), float(
        jnp.max(jnp.abs(out - y_ref)))

    print("KERNEL_OK")
</pallas_src>

<mosaic_0001>
module attributes {stable_mosaic.version = 11 : i64} {
  func.func @_effective_1x1_conv_kernel(%arg0: i32, %arg1: i32, %arg2: memref<3xf32, #tpu.memory_space<smem>>, %arg3: memref<1xf32, #tpu.memory_space<smem>>, %arg4: memref<1x3x2x128xf32, #tpu.memory_space<vmem>>, %arg5: memref<1x1x2x128xf32, #tpu.memory_space<vmem>>) attributes {dimension_semantics = [#tpu.dimension_semantics<parallel>, #tpu.dimension_semantics<parallel>], iteration_bounds = array<i64: 2, 1>, scalar_prefetch = 0 : i64, scratch_operands = 0 : i64, tpu.core_type = #tpu.core_type<tc>, window_params = [{transform_indices = @transform_0, window_bounds = array<i64: 3>}, {transform_indices = @transform_1, window_bounds = array<i64: 1>}, {transform_indices = @transform_2, window_bounds = array<i64: 1, 3, 2, 128>}, {transform_indices = @transform_3, window_bounds = array<i64: 1, 1, 2, 128>}]} {
    %c0 = arith.constant 0 : index
    %c0_0 = arith.constant 0 : index
    %c0_1 = arith.constant 0 : index
    %c0_2 = arith.constant 0 : index
    %0 = vector.load %arg4[%c0, %c0_0, %c0_1, %c0_2] : memref<1x3x2x128xf32, #tpu.memory_space<vmem>>, vector<1x1x2x128xf32>
    %1 = vector.shape_cast %0 : vector<1x1x2x128xf32> to vector<2x128xf32>
    %c0_3 = arith.constant 0 : index
    %2 = memref.load %arg2[%c0_3] : memref<3xf32, #tpu.memory_space<smem>>
    %3 = vector.broadcast %2 : f32 to vector<2x128xf32>
    %4 = arith.mulf %1, %3 : vector<2x128xf32>
    %c0_4 = arith.constant 0 : index
    %5 = memref.load %arg3[%c0_4] : memref<1xf32, #tpu.memory_space<smem>>
    %6 = vector.broadcast %5 : f32 to vector<2x128xf32>
    %7 = arith.addf %4, %6 : vector<2x128xf32>
    %c0_5 = arith.constant 0 : index
    %c1 = arith.constant 1 : index
    %c0_6 = arith.constant 0 : index
    %c0_7 = arith.constant 0 : index
    %8 = vector.load %arg4[%c0_5, %c1, %c0_6, %c0_7] : memref<1x3x2x128xf32, #tpu.memory_space<vmem>>, vector<1x1x2x128xf32>
    %9 = vector.shape_cast %8 : vector<1x1x2x128xf32> to vector<2x128xf32>
    %c1_8 = arith.constant 1 : index
    %10 = memref.load %arg2[%c1_8] : memref<3xf32, #tpu.memory_space<smem>>
    %11 = vector.broadcast %10 : f32 to vector<2x128xf32>
    %12 = arith.mulf %9, %11 : vector<2x128xf32>
    %13 = arith.addf %7, %12 : vector<2x128xf32>
    %c0_9 = arith.constant 0 : index
    %c2 = arith.constant 2 : index
    %c0_10 = arith.constant 0 : index
    %c0_11 = arith.constant 0 : index
    %14 = vector.load %arg4[%c0_9, %c2, %c0_10, %c0_11] : memref<1x3x2x128xf32, #tpu.memory_space<vmem>>, vector<1x1x2x128xf32>
    %15 = vector.shape_cast %14 : vector<1x1x2x128xf32> to vector<2x128xf32>
    %c2_12 = arith.constant 2 : index
    %16 = memref.load %arg2[%c2_12] : memref<3xf32, #tpu.memory_space<smem>>
    %17 = vector.broadcast %16 : f32 to vector<2x128xf32>
    %18 = arith.mulf %15, %17 : vector<2x128xf32>
    %19 = arith.addf %13, %18 : vector<2x128xf32>
    %c0_13 = arith.constant 0 : index
    %c0_14 = arith.constant 0 : index
    %c0_15 = arith.constant 0 : index
    %c0_16 = arith.constant 0 : index
    %20 = vector.load %arg5[%c0_13, %c0_14, %c0_15, %c0_16] : memref<1x1x2x128xf32, #tpu.memory_space<vmem>>, vector<1x1x2x128xf32>
    %21 = vector.shape_cast %20 : vector<1x1x2x128xf32> to vector<2x128xf32>
    %22 = vector.shape_cast %19 : vector<2x128xf32> to vector<1x1x2x128xf32>
    tpu.vector_store %arg5[%c0_13, %c0_14, %c0_15, %c0_16], %22 {strides = array<i32>} : memref<1x1x2x128xf32, #tpu.memory_space<vmem>>, vector<1x1x2x128xf32>,
    return
  }
  func.func @transform_0(%arg0: i32, %arg1: i32) -> i32 {
    %c0_i32 = arith.constant 0 : i32
    %c0_i32_0 = arith.constant 0 : i32
    return %c0_i32 : i32
  }
  func.func @transform_1(%arg0: i32, %arg1: i32) -> i32 {
    %c0_i32 = arith.constant 0 : i32
    %c0_i32_0 = arith.constant 0 : i32
    return %c0_i32 : i32
  }
  func.func @transform_2(%arg0: i32, %arg1: i32) -> (i32, i32, i32, i32) {
    %c0_i32 = arith.constant 0 : i32
    %c0_i32_0 = arith.constant 0 : i32
    %c0_i32_1 = arith.constant 0 : i32
    return %arg0, %c0_i32, %arg1, %c0_i32_0 : i32, i32, i32, i32
  }
  func.func @transform_3(%arg0: i32, %arg1: i32) -> (i32, i32, i32, i32) {
    %c0_i32 = arith.constant 0 : i32
    %c0_i32_0 = arith.constant 0 : i32
    %c0_i32_1 = arith.constant 0 : i32
    return %arg0, %c0_i32, %arg1, %c0_i32_0 : i32, i32, i32, i32
  }
}

</mosaic_0001>

<llo_original>
// kernel: _lambda_.1
$region0: #{_lambda_.1}
  #allocation0 [shape = 'u32[]', space=smem, size = 0x4, offset = 0x4, fixed_abs, tag = 'smem constant byte address 0x4 - core index']
  #allocation1 [shape = 'u32[144,128]{1,0:T(1,128)}', space=vmem, size = 0x12000, scoped, tag = 'internal scratch']
  #allocation2 [shape = 'f32[1]{0:T(128)S(6)}', space=smem, size = 0x200, scoped, tag = 'scoped memory for _lambda_.1']
  %s0 = inlined_call_operand.vmem [shape: f32[3], index: 0, kind: input, shape index: {}]
  %s1 = inlined_call_operand.<no memory space> [shape: f32[1], index: 1, kind: input, shape index: {}]
  %s2 = inlined_call_operand.vmem [shape: f32[2,3,2,128], index: 2, kind: input, shape index: {}]
  %s3 = inlined_call_operand.vmem [shape: f32[2,1,2,128], index: 3, kind: output, shape index: {}]
  %s4 = sld [smem:[#allocation0]]
  $region49: #{_lambda_.1} parent=0
    _
  %s6 = ssub.s32 1, %s4
  %s7 = scalar_select 0, %s6, %s4
  %8 = sst [smem:[#allocation2]] %s1
  $region1: #{_lambda_.1} parent=0
    #allocation3 [shape = 'u8[512]{0}', space=smem, size = 0x200, scoped, tag = 'input window, operand 0, single buffered']
    #allocation4 [shape = 's32[2]{0}', space=sflag, size = 0x8, scoped, tag = 'scoped memory for _lambda_.1']
    %9 = vsyncpa [#allocation4], 0
    loop: start=0, step=1, limit=4
    $region2: #{_lambda_.1} parent=1 // loop_pre_header
      _
    $region3: #{_lambda_.1} parent=1 // loop_header
      %s11 = sphi 0, %s15
      %p12 = scmp.ge.s32.totalorder %s11, 4
      %s18 = sphi 0, %s30
      %s19 = sphi 0, %s26
      %s20 = sphi 0, %s18
      %s21 = sphi 0, %s19
      %s22 = sphi 0, %s20
      %s23 = sphi 0, %s21
      %s31 = sphi 0, %s31
      %s33 = sphi 0, %s31
      %s34 = sphi 0, %s33
      %s48 = sphi 0, %s34
      %s52 = sphi 0, %s52
      %s54 = sphi 0, %s52
      %s55 = sphi 0, %s54
      %s69 = sphi 0, %s55
      %s77 = sphi 0, %s79
      %s80 = sphi 0, %s77
      %s81 = sphi 0, %s80
      %s97 = sphi 0, %s81
      %s105 = sphi 0, %s107
      %s108 = sphi 0, %s105
      %s109 = sphi 0, %s108
      %s125 = sphi 0, %s109
    $region4: #{_lambda_.1} parent=1 // loop_header_branch
      %14 = sbr.rel (%p12) target = $region8
    $region5: #{_lambda_.1} parent=1 // loop_body
      %s16 = ssub.s32 %s11, 1
      %s17 = ssub.s32 %s11, 2
      %s24 = sadd.s32 1, %s19
      %p25 = scmp.ge.s32.totalorder %s24, 1
      %s26 = scalar_select %p25, 0, %s24
      %s27 = sadd.s32 1, %s18
      %s28 = scalar_select %p25, %s27, %s18
      %p29 = scmp.ge.s32.totalorder %s28, 2
      %s30 = scalar_select %p29, 0, %s28
      %s32 = sadd.s32 %s31, 1
      %p35 = scmp.eq.s32.totalorder %s11, 1
      %p36 = scmp.ne.s32.totalorder %s31, %s33
      %p37 = scmp.eq.s32.totalorder %s11, 0
      %p38 = por %p36, %p37
      %p39 = scmp.ne.s32.totalorder %s31, %s33
      %p40 = scmp.eq.s32.totalorder %s16, 1
      %p41 = por %p39, %p40
      %p42 = scmp.ne.s32.totalorder %s33, %s34
      %p43 = scmp.eq.s32.totalorder %s16, 0
      %p44 = por %p42, %p43
      %p45 = scmp.ne.s32.totalorder %s33, %s34
      %p46 = scmp.eq.s32.totalorder %s17, 1
      %p47 = por %p45, %p46
      %p49 = scmp.ne.s32.totalorder %s34, %s48
      %p50 = scmp.eq.s32.totalorder %s17, 0
      %p51 = por %p49, %p50
      %s53 = sadd.s32 %s52, 1
      %p56 = scmp.eq.s32.totalorder %s11, 1
      %p57 = scmp.ne.s32.totalorder %s52, %s54
      %p58 = scmp.eq.s32.totalorder %s11, 0
      %p59 = por %p57, %p58
      %p60 = scmp.ne.s32.totalorder %s52, %s54
      %p61 = scmp.eq.s32.totalorder %s16, 1
      %p62 = por %p60, %p61
      %p63 = scmp.ne.s32.totalorder %s54, %s55
      %p64 = scmp.eq.s32.totalorder %s16, 0
      %p65 = por %p63, %p64
      %p66 = scmp.ne.s32.totalorder %s54, %s55
      %p67 = scmp.eq.s32.totalorder %s17, 1
      %p68 = por %p66, %p67
      %p70 = scmp.ne.s32.totalorder %s55, %s69
      %p71 = scmp.eq.s32.totalorder %s17, 0
      %p72 = por %p70, %p71
      %s73 = ssub.s32 %s18, %s30
      %s74 = ssub.s32 %s19, %s26
      %s75 = sor.u32 %s73, %s74
      %p76 = scmp.eq.s32.totalorder %s75, 0
      %s78 = sadd.s32 %s77, 1
      %s79 = scalar_select %p76, %s77, %s78
      %p82 = pneg %p76
      %p83 = scmp.eq.s32.totalorder %s11, 1
      %p84 = por %p82, %p83
      %p85 = scmp.ne.s32.totalorder %s77, %s80
      %p86 = scmp.eq.s32.totalorder %s11, 0
      %p87 = por %p85, %p86
      %p88 = scmp.ne.s32.totalorder %s77, %s80
      %p89 = scmp.eq.s32.totalorder %s16, 1
      %p90 = por %p88, %p89
      %p91 = scmp.ne.s32.totalorder %s80, %s81
      %p92 = scmp.eq.s32.totalorder %s16, 0
      %p93 = por %p91, %p92
      %p94 = scmp.ne.s32.totalorder %s80, %s81
      %p95 = scmp.eq.s32.totalorder %s17, 1
      %p96 = por %p94, %p95
      %p98 = scmp.ne.s32.totalorder %s81, %s97
      %p99 = scmp.eq.s32.totalorder %s17, 0
      %p100 = por %p98, %p99
      %s101 = ssub.s32 %s18, %s30
      %s102 = ssub.s32 %s19, %s26
      %s103 = sor.u32 %s101, %s102
      %p104 = scmp.eq.s32.totalorder %s103, 0
      %s106 = sadd.s32 %s105, 1
      %s107 = scalar_select %p104, %s105, %s106
      %p110 = pneg %p104
      %p111 = scmp.eq.s32.totalorder %s11, 1
      %p112 = por %p110, %p111
      %p113 = scmp.ne.s32.totalorder %s105, %s108
      %p114 = scmp.eq.s32.totalorder %s11, 0
      %p115 = por %p113, %p114
      %p116 = scmp.ne.s32.totalorder %s105, %s108
      %p117 = scmp.eq.s32.totalorder %s16, 1
      %p118 = por %p116, %p117
      %p119 = scmp.ne.s32.totalorder %s108, %s109
      %p120 = scmp.eq.s32.totalorder %s16, 0
      %p121 = por %p119, %p120
      %p122 = scmp.ne.s32.totalorder %s108, %s109
      %p123 = scmp.eq.s32.totalorder %s17, 1
      %p124 = por %p122, %p123
      %p126 = scmp.ne.s32.totalorder %s109, %s125
      %p127 = scmp.eq.s32.totalorder %s17, 0
      %p128 = por %p126, %p127
      %p129 = scmp.le.s32.totalorder 1, %s11
      %p130 = scmp.lt.s32.totalorder %s11, 3
      %p131 = pnand %p129, %p130
      %p132 = pneg %p131
      // Predicated region
      $region9: #{_lambda_.1} parent=5 // pred_check
        _
      $region10: #{_lambda_.1} parent=5 // pred_check_branch
        %134 = sbr.rel (%p131) target = $region12
      $region11: #{_lambda_.1} parent=5 // pred_region
        %s135 = ssub.s32 %s11, 1
        // Predicated region
        $region13: #{_lambda_.1} parent=11 // pred_check
          %p136 = pneg %p44
        $region14: #{_lambda_.1} parent=11 // pred_check_branch
          %138 = sbr.rel (%p136) target = $region16
        $region15: #{_lambda_.1} parent=11 // pred_region
          %s140 = ssub.s32 16, 16
          %141 = vsyncadd [#allocation4], %s140
          %s143 = sshll.u32 %s0, 4
          %s144 = int_to_ptr.vmem [resolvable:$true] %s143
          %146 = dma.vmem_to_smem %s144, 16, [#allocation3], [#allocation4]
        $region16: #{_lambda_.1} parent=11 // pred_fallthru
          _
        // Predicated region
        $region17: #{_lambda_.1} parent=11 // pred_check
          %p147 = pneg %p65
        $region18: #{_lambda_.1} parent=11 // pred_check_branch
          %149 = sbr.rel (%p147) target = $region20
        $region19: #{_lambda_.1} parent=11 // pred_region
          _
        $region20: #{_lambda_.1} parent=11 // pred_fallthru
          _
      $region12: #{_lambda_.1} parent=5 // pred_fallthru
        _
      %p150 = scmp.lt.s32.totalorder %s11, 2
      // Predicated region
      $region21: #{_lambda_.1} parent=5 // pred_check
        %p151 = pneg %p150
      $region22: #{_lambda_.1} parent=5 // pred_check_branch
        %153 = sbr.rel (%p151) target = $region24
      $region23: #{_lambda_.1} parent=5 // pred_region
        // Predicated region
        $region25: #{_lambda_.1} parent=23 // pred_check
          %p154 = pneg %p87
        $region26: #{_lambda_.1} parent=23 // pred_check_branch
          %156 = sbr.rel (%p154) target = $region28
        $region27: #{_lambda_.1} parent=23 // pred_region
          %p157 = scmp.lt.s32.totalorder %s18, 1
          %s158 = scalar_select %p157, %s18, 1
          %p159 = scmp.lt.s32.totalorder %s19, 0
          %s160 = scalar_select %p159, %s19, 0
          %s161 = smul.addr %s158, 3
          %s162 = sadd.s32 %s160, %s161
          %s163 = smul.addr %s162, 2
          %s164 = scalar_lea.vmem %s2, %s163
        $region28: #{_lambda_.1} parent=23 // pred_fallthru
          _
      $region24: #{_lambda_.1} parent=5 // pred_fallthru
        _
      %p165 = scmp.le.s32.totalorder 1, %s11
      %p166 = scmp.lt.s32.totalorder %s11, 3
      %p167 = pnand %p165, %p166
      %p168 = pneg %p167
      // Predicated region
      $region29: #{_lambda_.1} parent=5 // pred_check
        _
      $region30: #{_lambda_.1} parent=5 // pred_check_branch
        %170 = sbr.rel (%p167) target = $region32
      $region31: #{_lambda_.1} parent=5 // pred_region
        %s171 = ssub.s32 %s11, 1
        // Predicated region
        $region33: #{_lambda_.1} parent=31 // pred_check
          %p172 = pneg %p44
        $region34: #{_lambda_.1} parent=31 // pred_check_branch
          %174 = sbr.rel (%p172) target = $region36
        $region35: #{_lambda_.1} parent=31 // pred_region
          %175 = dma.done [#allocation4], 16
        $region36: #{_lambda_.1} parent=31 // pred_fallthru
          _
        %176 = sfence
        %p177 = pneg %p44
        %p178 = pneg %p41
        %p179 = pneg %p65
        %p180 = pneg %p62
        %p181 = scmp.lt.s32.totalorder %s20, 1
        %s182 = scalar_select %p181, %s20, 1
        %p183 = scmp.lt.s32.totalorder %s21, 0
        %s184 = scalar_select %p183, %s21, 0
        %s185 = smul.addr %s182, 3
        %s186 = sadd.s32 %s184, %s185
        %s187 = smul.addr %s186, 2
        %s188 = scalar_lea.vmem %s2, %s187
        %p189 = pneg %p93
        %p190 = pneg %p90
        %p191 = pneg %p121
        %p192 = pneg %p118
        %p193 = scmp.lt.s32.totalorder %s20, 1
        %s194 = scalar_select %p193, %s20, 1
        %p195 = scmp.lt.s32.totalorder %s21, 0
        %s196 = scalar_select %p195, %s21, 0
        %s197 = sadd.s32 %s196, %s194
        %s198 = smul.addr %s197, 2
        %s199 = scalar_lea.vmem %s3, %s198
        %p200 = scmp.lt.s32.totalorder %s20, 1
        %s201 = scalar_select %p200, %s20, 1
        %p202 = scmp.lt.s32.totalorder %s21, 0
        %s203 = scalar_select %p202, %s21, 0
        %s204 = smul.addr %s201, 3
        %s205 = sadd.s32 %s203, %s204
        %s206 = smul.addr %s205, 2
        %s207 = scalar_lea.vmem %s2, %s206
        %p208 = scmp.lt.s32.totalorder %s20, 1
        %s209 = scalar_select %p208, %s20, 1
        %p210 = scmp.lt.s32.totalorder %s21, 0
        %s211 = scalar_select %p210, %s21, 0
        %s212 = sadd.s32 %s211, %s209
        %s213 = smul.addr %s212, 2
        %s214 = scalar_lea.vmem %s3, %s213
        %v215 = vld [vmem:[%s207] sm:$0x3]
        %s216 = sld [smem:[#allocation3]]
        %v217 = vstv %s216
        %v218 = vmul.f32 %v215, %v217
        %s219 = sld [smem:[#allocation2]]
        %v220 = vstv %s219
        %v221 = vadd.f32 %v218, %v220
        %s222 = scalar_lea.vmem %s207, 2
        %v223 = vld [vmem:[%s222] sm:$0x3]
        %s224 = sld [smem:[#allocation3 + $0x1]]
        %v225 = vstv %s224
        %v226 = vmul.f32 %v223, %v225
        %v227 = vadd.f32 %v221, %v226
        %s228 = scalar_lea.vmem %s207, 4
        %v229 = vld [vmem:[%s228] sm:$0x3]
        %s230 = sld [smem:[#allocation3 + $0x2]]
        %v231 = vstv %s230
        %v232 = vmul.f32 %v229, %v231
        %v233 = vadd.f32 %v227, %v232
        %234 = vst [vmem:[%s214] sm:$0x3] %v233
        %p235 = scmp.lt.s32.totalorder %s20, 1
        %s236 = scalar_select %p235, %s20, 1
        %p237 = scmp.lt.s32.totalorder %s21, 0
        %s238 = scalar_select %p237, %s21, 0
        %s239 = sadd.s32 %s238, %s236
        %s240 = smul.addr %s239, 2
        %s241 = scalar_lea.vmem %s3, %s240
        // Predicated region
        $region37: #{_lambda_.1} parent=31 // pred_check
          %p242 = pneg %p118
        $region38: #{_lambda_.1} parent=31 // pred_check_branch
          %244 = sbr.rel (%p242) target = $region40
        $region39: #{_lambda_.1} parent=31 // pred_region
          _
        $region40: #{_lambda_.1} parent=31 // pred_fallthru
          _
      $region32: #{_lambda_.1} parent=5 // pred_fallthru
        _
      %p245 = scmp.le.s32.totalorder 2, %s11
      // Predicated region
      $region41: #{_lambda_.1} parent=5 // pred_check
        %p246 = pneg %p245
      $region42: #{_lambda_.1} parent=5 // pred_check_branch
        %248 = sbr.rel (%p246) target = $region44
      $region43: #{_lambda_.1} parent=5 // pred_region
        %s249 = ssub.s32 %s11, 2
        // Predicated region
        $region45: #{_lambda_.1} parent=43 // pred_check
          %p250 = pneg %p124
        $region46: #{_lambda_.1} parent=43 // pred_check_branch
          %252 = sbr.rel (%p250) target = $region48
        $region47: #{_lambda_.1} parent=43 // pred_region
          %p253 = scmp.lt.s32.totalorder %s22, 1
          %s254 = scalar_select %p253, %s22, 1
          %p255 = scmp.lt.s32.totalorder %s23, 0
          %s256 = scalar_select %p255, %s23, 0
          %s257 = sadd.s32 %s256, %s254
          %s258 = smul.addr %s257, 2
          %s259 = scalar_lea.vmem %s3, %s258
        $region48: #{_lambda_.1} parent=43 // pred_fallthru
          _
      $region44: #{_lambda_.1} parent=5 // pred_fallthru
        _
    $region6: #{_lambda_.1} parent=1 // loop_footer
      %s15 = sadd.s32 1, %s11
    $region7: #{_lambda_.1} parent=1 // loop_footer_branch
      %10 = sbr.rel target = $region3
    $region8: #{_lambda_.1} parent=1 // loop_exit
      _
    %260 = vsyncpa [#allocation4], 1
    %s261 = scalar_lea.sflag [#allocation4], 1
    %262 = vsyncpa %s261, 1

</llo_original>
